<compile_context>
chip_gen: v6e
topology: v6e:2x2x1
jax: 0.10.0
libtpu: 0.0.40
codegen_flags: <defaults>
</compile_context>

<pallas_src>
import jax
import jax.numpy as jnp
from jax.experimental import pallas as pl
from jax.experimental.pallas import tpu as pltpu

LANE = 128


def _round_up(x, m):
    return (x + m - 1) // m * m


def _pick_tiles(n):
    """(row tile, k tile) for the streamed adjacency blocks."""
    if n >= 2048:
        tm = 512
    elif n >= 512:
        tm = 256
    else:
        tm = 128
    if n >= 8192:
        tk = 2048
    elif n >= 2048:
        tk = 1024
    elif n >= 512:
        tk = 512
    else:
        tk = 128
    return tm, tk


def _vmem_limit_bytes():
    cap = 64 * 1024 * 1024                      # conservative fallback (v7x/TC)
    try:
        cap = int(pltpu.get_tpu_info().vmem_capacity_bytes)
    except Exception:
        pass
    # Leave headroom for compiler-internal scratch; cap at 112 MiB (v5e/v6e).
    return min(cap * 7 // 8, 112 * 1024 * 1024)


def _accumulate_neighbors(x_ref, a_ref, acc_ref):
    """acc += Adj[row_tile, k_tile] @ x[k_tile, :]   (exact 0/1 A, f32 acc)."""
    k = pl.program_id(1)

    @pl.when(k == 0)
    def _():
        acc_ref[...] = jnp.zeros_like(acc_ref)

    tk = a_ref.shape[1]
    start = pl.multiple_of(k * tk, tk)
    x_k = x_ref[pl.ds(start, tk), :]                      # (tk, F) bf16, resident
    a_tile = a_ref[...].astype(jnp.bfloat16)              # int8 0/1 -> bf16, exact
    acc_ref[...] += jnp.dot(a_tile, x_k, preferred_element_type=jnp.float32)


def gin_layer0_kernel(x_ref, a_ref, dinv_ref, eps_ref, w_ref, b_ref,
                      out_ref, acc_ref):
    """h0 = relu(((1+eps0)*h + deg_inv*(Adj@h)) @ W0 + b0); dropout is eval-identity."""
    _accumulate_neighbors(x_ref, a_ref, acc_ref)

    i = pl.program_id(0)
    k = pl.program_id(1)

    @pl.when(k == pl.num_programs(1) - 1)
    def _():
        tm = a_ref.shape[0]
        row0 = pl.multiple_of(i * tm, tm)
        x_i = x_ref[pl.ds(row0, tm), :].astype(jnp.float32)
        d_i = dinv_ref[pl.ds(row0, tm), :]                 # (tm, 1) exact f32 1/deg
        pre = (1.0 + eps_ref[0]) * x_i + d_i * acc_ref[...]
        h = jnp.dot(pre.astype(jnp.bfloat16), w_ref[...],
                    preferred_element_type=jnp.float32) + b_ref[...]
        out_ref[...] = jnp.maximum(h, 0.0).astype(out_ref.dtype)


def gin_layer1_heads_kernel(x_ref, a_ref, dinv_ref, eps_ref, w1_ref, b1_ref,
                            wh_ref, out_ref, acc_ref):
    """Packed lane-dense output = [score | h_ss | 0]:
         h1_half = relu(((1+eps1)*h0 + deg_inv*(Adj@h0)) @ (0.5*W1) + 0.5*b1)
         heads   = h0 @ [0.5*Wp | Wss | 0]
         out     = heads + h1_half
    """
    _accumulate_neighbors(x_ref, a_ref, acc_ref)

    i = pl.program_id(0)
    k = pl.program_id(1)

    @pl.when(k == pl.num_programs(1) - 1)
    def _():
        tm = a_ref.shape[0]
        row0 = pl.multiple_of(i * tm, tm)
        h0_i = x_ref[pl.ds(row0, tm), :]                   # (tm, F) bf16
        d_i = dinv_ref[pl.ds(row0, tm), :]
        pre = (1.0 + eps_ref[0]) * h0_i.astype(jnp.float32) + d_i * acc_ref[...]
        h1_half = jnp.maximum(
            jnp.dot(pre.astype(jnp.bfloat16), w1_ref[...],
                    preferred_element_type=jnp.float32) + b1_ref[...], 0.0)
        heads = jnp.dot(h0_i, wh_ref[...], preferred_element_type=jnp.float32)
        out_ref[...] = (heads + h1_half).astype(out_ref.dtype)


def gin_net_ss_forward(adj_dst, h, params):
    """adj_dst[v, u] = 1 iff there is an edge u -> v (destination node on rows).
    Returns (score_over_layer [N, n_classes], h_ss [N, num_par]) in f32."""
    n, in_dim = h.shape
    hidden = params["w0"].shape[1]
    n_classes = params["w1"].shape[1]
    num_par = params["wss"].shape[1]

    f_in = _round_up(in_dim, LANE)
    f_hid = _round_up(hidden, LANE)
    f_out = _round_up(n_classes + num_par, LANE)

    tm, tk = _pick_tiles(n)
    # Even row-tile count (megacore load balance) and tk-aligned k extent.
    n_pad = _round_up(n, max(tk, 2 * tm))

    # ---- graph: exact 0/1 adjacency streamed as int8, exact f32 1/deg ------
    a_p = jnp.zeros((n_pad, n_pad), jnp.int8).at[:n, :n].set(
        adj_dst.astype(jnp.int8))
    deg = jnp.sum(adj_dst.astype(jnp.float32), axis=1)
    dinv_p = jnp.zeros((n_pad, 1), jnp.float32).at[:n, 0].set(
        1.0 / jnp.maximum(deg, 1.0))

    # ---- node features (bf16, lane padded) ---------------------------------
    h_p = jnp.zeros((n_pad, f_in), jnp.bfloat16).at[:n, :in_dim].set(
        h.astype(jnp.bfloat16))

    # ---- weights bf16 (single-pass MXU), biases f32; fold /2 into Wp,W1,b1 --
    w0 = jnp.zeros((f_in, f_hid), jnp.bfloat16).at[:in_dim, :hidden].set(
        params["w0"].astype(jnp.bfloat16))
    b0 = jnp.zeros((1, f_hid), jnp.float32).at[:, :hidden].set(
        params["b0"].reshape(1, -1))
    w1 = jnp.zeros((f_hid, f_out), jnp.bfloat16).at[:hidden, :n_classes].set(
        (0.5 * params["w1"]).astype(jnp.bfloat16))
    b1 = jnp.zeros((1, f_out), jnp.float32).at[:, :n_classes].set(
        0.5 * params["b1"].reshape(1, -1))
    w_heads = (jnp.zeros((f_hid, f_out), jnp.bfloat16)
               .at[:hidden, :n_classes].set((0.5 * params["wp"]).astype(jnp.bfloat16))
               .at[:hidden, n_classes:n_classes + num_par].set(
                   params["wss"].astype(jnp.bfloat16)))

    grid = (n_pad // tm, n_pad // tk)
    vmem = pl.BlockSpec(memory_space=pltpu.MemorySpace.VMEM)  # whole-resident (1 copy)
    smem = pl.BlockSpec(memory_space=pltpu.MemorySpace.SMEM)  # scalar eps
    a_spec = pl.BlockSpec((tm, tk), lambda i, k: (i, k))      # streamed Adj tiles
    cparams = pltpu.CompilerParams(
        dimension_semantics=("parallel", "arbitrary"),        # rows //, k reduce
        vmem_limit_bytes=_vmem_limit_bytes())

    # ---- pass 1: GIN layer 0 (h -> h0) --------------------------------------
    h0 = pl.pallas_call(
        gin_layer0_kernel,
        out_shape=jax.ShapeDtypeStruct((n_pad, f_hid), jnp.bfloat16),
        grid=grid,
        in_specs=[vmem, a_spec, vmem, smem, vmem, vmem],
        out_specs=pl.BlockSpec((tm, f_hid), lambda i, k: (i, 0)),
        scratch_shapes=[pltpu.VMEM((tm, f_in), jnp.float32)],
        compiler_params=cparams,
    )(h_p, a_p, dinv_p, params["eps0"], w0, b0)

    # ---- pass 2: GIN layer 1 + fused heads -> packed [score | h_ss | 0] -----
    packed = pl.pallas_call(
        gin_layer1_heads_kernel,
        out_shape=jax.ShapeDtypeStruct((n_pad, f_out), jnp.bfloat16),
        grid=grid,
        in_specs=[vmem, a_spec, vmem, smem, vmem, vmem, vmem],
        out_specs=pl.BlockSpec((tm, f_out), lambda i, k: (i, 0)),
        scratch_shapes=[pltpu.VMEM((tm, f_hid), jnp.float32)],
        compiler_params=cparams,
    )(h0, a_p, dinv_p, params["eps1"], w1, b1, w_heads)

    score = packed[:n, :n_classes].astype(jnp.float32)
    h_ss = packed[:n, n_classes:n_classes + num_par].astype(jnp.float32)
    return score, h_ss


def reference_forward(adj_dst, h, params):
    """Pure-JAX f32 reference of the same forward pass."""
    deg = jnp.sum(adj_dst, axis=1, keepdims=True)
    a_mean = adj_dst / jnp.maximum(deg, 1.0)
    eps0 = params["eps0"][0]
    eps1 = params["eps1"][0]
    h0 = jnp.maximum(((1.0 + eps0) * h + a_mean @ h) @ params["w0"] + params["b0"], 0.0)
    h1 = jnp.maximum(((1.0 + eps1) * h0 + a_mean @ h0) @ params["w1"] + params["b1"], 0.0)
    score = (h0 @ params["wp"] + h1) * 0.5
    h_ss = h0 @ params["wss"]
    return score, h_ss


if __name__ == "__main__":
    # Small shapes consistent with the module (N not tile-aligned on purpose,
    # to exercise the padding path).
    N, in_dim, hidden_dim, n_classes, num_par = 200, 16, 32, 8, 4

    key = jax.random.PRNGKey(0)
    k_adj, k_h, k_w0, k_b0, k_w1, k_b1, k_wp, k_wss = jax.random.split(key, 8)

    # Random directed graph: adj[u, v] = 1 means edge u -> v.
    adj = (jax.random.uniform(k_adj, (N, N)) < 0.1).astype(jnp.float32)
    adj = adj * (1.0 - jnp.eye(N, dtype=jnp.float32))      # drop self loops
    adj_dst = adj.T                                        # adj_dst[v, u] = 1 iff u -> v

    h = jax.random.normal(k_h, (N, in_dim), dtype=jnp.float32)

    # Weights stored as [in, out] so y = x @ W + b.  eps are learnable
    # (GIN learn_eps=True); small nonzero values exercise that path.
    params = {
        "eps0": jnp.full((1,), 0.1, jnp.float32),
        "eps1": jnp.full((1,), -0.05, jnp.float32),
        "w0": jax.random.normal(k_w0, (in_dim, hidden_dim), jnp.float32) * 0.1,
        "b0": jax.random.normal(k_b0, (1, hidden_dim), jnp.float32) * 0.1,
        "w1": jax.random.normal(k_w1, (hidden_dim, n_classes), jnp.float32) * 0.1,
        "b1": jax.random.normal(k_b1, (1, n_classes), jnp.float32) * 0.1,
        "wp": jax.random.normal(k_wp, (hidden_dim, n_classes), jnp.float32) * 0.1,
        "wss": jax.random.normal(k_wss, (hidden_dim, num_par), jnp.float32) * 0.1,
    }

    score, h_ss = gin_net_ss_forward(adj_dst, h, params)
    jax.block_until_ready((score, h_ss))

    score_ref, h_ss_ref = reference_forward(adj_dst, h, params)
    assert score.shape == (N, n_classes) and h_ss.shape == (N, num_par)
    # Adjacency is exact (int8) and 1/deg is f32; remaining error is bf16
    # features / weights / output, well inside the tolerance below.
    assert jnp.allclose(score, score_ref, atol=5e-2, rtol=5e-2)
    assert jnp.allclose(h_ss, h_ss_ref, atol=5e-2, rtol=5e-2)

    print("KERNEL_OK")
</pallas_src>

<mosaic_0001>
module attributes {stable_mosaic.version = 11 : i64} {
  func.func @gin_layer0_kernel(%arg0: i32, %arg1: i32, %arg2: memref<256x128xbf16, #tpu.memory_space<vmem>>, %arg3: memref<128x128xi8, #tpu.memory_space<vmem>>, %arg4: memref<256x1xf32, #tpu.memory_space<vmem>>, %arg5: memref<1xf32, #tpu.memory_space<smem>>, %arg6: memref<128x128xbf16, #tpu.memory_space<vmem>>, %arg7: memref<1x128xf32, #tpu.memory_space<vmem>>, %arg8: memref<128x128xbf16, #tpu.memory_space<vmem>>, %arg9: memref<128x128xf32, #tpu.memory_space<vmem>>) attributes {dimension_semantics = [#tpu.dimension_semantics<parallel>, #tpu.dimension_semantics<arbitrary>], iteration_bounds = array<i64: 2, 2>, scalar_prefetch = 0 : i64, scratch_operands = 1 : i64, tpu.core_type = #tpu.core_type<tc>, window_params = [{pipeline_mode = #tpu.pipeline_mode<synchronous>, transform_indices = @transform_0, window_bounds = array<i64: 256, 128>}, {transform_indices = @transform_1, window_bounds = array<i64: 128, 128>}, {pipeline_mode = #tpu.pipeline_mode<synchronous>, transform_indices = @transform_2, window_bounds = array<i64: 256, 1>}, {transform_indices = @transform_3, window_bounds = array<i64: 1>}, {pipeline_mode = #tpu.pipeline_mode<synchronous>, transform_indices = @transform_4, window_bounds = array<i64: 128, 128>}, {pipeline_mode = #tpu.pipeline_mode<synchronous>, transform_indices = @transform_5, window_bounds = array<i64: 1, 128>}, {transform_indices = @transform_6, window_bounds = array<i64: 128, 128>}]} {
    %c0_i32 = arith.constant 0 : i32
    %0 = arith.cmpi eq, %arg1, %c0_i32 : i32
    %1 = arith.extui %0 : i1 to i32
    %c0_i32_0 = arith.constant 0 : i32
    %2 = arith.cmpi ne, %1, %c0_i32_0 : i32
    scf.if %2 {
      %cst_8 = arith.constant 0.000000e+00 : f32
      %16 = vector.broadcast %cst_8 : f32 to vector<128x128xf32>
      %c0_9 = arith.constant 0 : index
      %c0_10 = arith.constant 0 : index
      %17 = vector.load %arg9[%c0_9, %c0_10] : memref<128x128xf32, #tpu.memory_space<vmem>>, vector<128x128xf32>
      tpu.vector_store %arg9[%c0_9, %c0_10], %16 {strides = array<i32>} : memref<128x128xf32, #tpu.memory_space<vmem>>, vector<128x128xf32>,
    } else {
    }
    %c128_i32 = arith.constant 128 : i32
    %3 = arith.muli %arg1, %c128_i32 : i32
    %4 = tpu.assume_multiple %3, 128 : i32
    %5 = arith.index_cast %4 : i32 to index
    %c0 = arith.constant 0 : index
    %6 = vector.load %arg2[%5, %c0] : memref<256x128xbf16, #tpu.memory_space<vmem>>, vector<128x128xbf16>
    %c0_1 = arith.constant 0 : index
    %c0_2 = arith.constant 0 : index
    %7 = vector.load %arg3[%c0_1, %c0_2] : memref<128x128xi8, #tpu.memory_space<vmem>>, vector<128x128xi8>
    %8 = arith.sitofp %7 : vector<128x128xi8> to vector<128x128xbf16>
    %c0_3 = arith.constant 0 : index
    %c0_4 = arith.constant 0 : index
    %9 = vector.load %arg9[%c0_3, %c0_4] : memref<128x128xf32, #tpu.memory_space<vmem>>, vector<128x128xf32>
    %cst = arith.constant dense<0.000000e+00> : vector<128x128xf32>
    %10 = tpu.matmul %8, %6, %cst {dimension_numbers = #tpu.dot_dimension_numbers<[1], [0], [0], [1], [0, 0, 1, 1], [], []>} : vector<128x128xbf16>, vector<128x128xbf16>, vector<128x128xf32> -> vector<128x128xf32>
    %11 = arith.addf %9, %10 : vector<128x128xf32>
    %c0_5 = arith.constant 0 : index
    %c0_6 = arith.constant 0 : index
    %12 = vector.load %arg9[%c0_5, %c0_6] : memref<128x128xf32, #tpu.memory_space<vmem>>, vector<128x128xf32>
    tpu.vector_store %arg9[%c0_5, %c0_6], %11 {strides = array<i32>} : memref<128x128xf32, #tpu.memory_space<vmem>>, vector<128x128xf32>,
    %c1_i32 = arith.constant 1 : i32
    %13 = arith.cmpi eq, %arg1, %c1_i32 : i32
    %14 = arith.extui %13 : i1 to i32
    %c0_i32_7 = arith.constant 0 : i32
    %15 = arith.cmpi ne, %14, %c0_i32_7 : i32
    scf.if %15 {
      %c128_i32_8 = arith.constant 128 : i32
      %16 = arith.muli %arg0, %c128_i32_8 : i32
      %17 = tpu.assume_multiple %16, 128 : i32
      %18 = arith.index_cast %17 : i32 to index
      %c0_9 = arith.constant 0 : index
      %19 = vector.load %arg2[%18, %c0_9] : memref<256x128xbf16, #tpu.memory_space<vmem>>, vector<128x128xbf16>
      %20 = arith.extf %19 : vector<128x128xbf16> to vector<128x128xf32>
      %21 = arith.index_cast %17 : i32 to index
      %c0_10 = arith.constant 0 : index
      %22 = vector.load %arg4[%21, %c0_10] : memref<256x1xf32, #tpu.memory_space<vmem>>, vector<128x1xf32>
      %c0_11 = arith.constant 0 : index
      %23 = memref.load %arg5[%c0_11] : memref<1xf32, #tpu.memory_space<smem>>
      %cst_12 = arith.constant 1.000000e+00 : f32
      %24 = arith.addf %cst_12, %23 : f32
      %25 = vector.broadcast %24 : f32 to vector<128x128xf32>
      %26 = arith.mulf %25, %20 : vector<128x128xf32>
      %c0_13 = arith.constant 0 : index
      %c0_14 = arith.constant 0 : index
      %27 = vector.load %arg9[%c0_13, %c0_14] : memref<128x128xf32, #tpu.memory_space<vmem>>, vector<128x128xf32>
      %28 = vector.broadcast %22 : vector<128x1xf32> to vector<128x128xf32>
      %29 = arith.mulf %28, %27 : vector<128x128xf32>
      %30 = arith.addf %26, %29 : vector<128x128xf32>
      %31 = arith.truncf %30 : vector<128x128xf32> to vector<128x128xbf16>
      %c0_15 = arith.constant 0 : index
      %c0_16 = arith.constant 0 : index
      %32 = vector.load %arg6[%c0_15, %c0_16] : memref<128x128xbf16, #tpu.memory_space<vmem>>, vector<128x128xbf16>
      %cst_17 = arith.constant dense<0.000000e+00> : vector<128x128xf32>
      %33 = tpu.matmul %31, %32, %cst_17 {dimension_numbers = #tpu.dot_dimension_numbers<[1], [0], [0], [1], [0, 0, 1, 1], [], []>} : vector<128x128xbf16>, vector<128x128xbf16>, vector<128x128xf32> -> vector<128x128xf32>
      %c0_18 = arith.constant 0 : index
      %c0_19 = arith.constant 0 : index
      %34 = vector.load %arg7[%c0_18, %c0_19] : memref<1x128xf32, #tpu.memory_space<vmem>>, vector<1x128xf32>
      %35 = vector.broadcast %34 : vector<1x128xf32> to vector<128x128xf32>
      %36 = arith.addf %33, %35 : vector<128x128xf32>
      %cst_20 = arith.constant 0.000000e+00 : f32
      %37 = vector.broadcast %cst_20 : f32 to vector<128x128xf32>
      %38 = arith.maximumf %36, %37 : vector<128x128xf32>
      %39 = arith.truncf %38 : vector<128x128xf32> to vector<128x128xbf16>
      %c0_21 = arith.constant 0 : index
      %c0_22 = arith.constant 0 : index
      %40 = vector.load %arg8[%c0_21, %c0_22] : memref<128x128xbf16, #tpu.memory_space<vmem>>, vector<128x128xbf16>
      tpu.vector_store %arg8[%c0_21, %c0_22], %39 {strides = array<i32>} : memref<128x128xbf16, #tpu.memory_space<vmem>>, vector<128x128xbf16>,
    } else {
    }
    return
  }
  func.func @transform_0(%arg0: i32, %arg1: i32) -> (i32, i32) {
    %c0_i32 = arith.constant 0 : i32
    %c0_i32_0 = arith.constant 0 : i32
    %c0_i32_1 = arith.constant 0 : i32
    return %c0_i32, %c0_i32_0 : i32, i32
  }
  func.func @transform_1(%arg0: i32, %arg1: i32) -> (i32, i32) {
    %c0_i32 = arith.constant 0 : i32
    return %arg0, %arg1 : i32, i32
  }
  func.func @transform_2(%arg0: i32, %arg1: i32) -> (i32, i32) {
    %c0_i32 = arith.constant 0 : i32
    %c0_i32_0 = arith.constant 0 : i32
    %c0_i32_1 = arith.constant 0 : i32
    return %c0_i32, %c0_i32_0 : i32, i32
  }
  func.func @transform_3(%arg0: i32, %arg1: i32) -> i32 {
    %c0_i32 = arith.constant 0 : i32
    %c0_i32_0 = arith.constant 0 : i32
    return %c0_i32 : i32
  }
  func.func @transform_4(%arg0: i32, %arg1: i32) -> (i32, i32) {
    %c0_i32 = arith.constant 0 : i32
    %c0_i32_0 = arith.constant 0 : i32
    %c0_i32_1 = arith.constant 0 : i32
    return %c0_i32, %c0_i32_0 : i32, i32
  }
  func.func @transform_5(%arg0: i32, %arg1: i32) -> (i32, i32) {
    %c0_i32 = arith.constant 0 : i32
    %c0_i32_0 = arith.constant 0 : i32
    %c0_i32_1 = arith.constant 0 : i32
    return %c0_i32, %c0_i32_0 : i32, i32
  }
  func.func @transform_6(%arg0: i32, %arg1: i32) -> (i32, i32) {
    %c0_i32 = arith.constant 0 : i32
    %c0_i32_0 = arith.constant 0 : i32
    return %arg0, %c0_i32 : i32, i32
  }
}

</mosaic_0001>

<llo_original>
// kernel: tpu_custom_call.1
$region0: #{tpu_custom_call.1}
  #allocation0 [shape = 'u32[]', space=smem, size = 0x4, offset = 0x4, fixed_abs, tag = 'smem constant byte address 0x4 - core index']
  #allocation1 [shape = 'u32[144,128]{1,0:T(1,128)}', space=vmem, size = 0x12000, scoped, tag = 'internal scratch']
  #allocation2 [shape = 'f32[128,128]{1,0:T(8,128)}', space=vmem, size = 0x10000, scoped, tag = 'scratch operand']
  #allocation3 [shape = 'f32[1]{0:T(128)S(6)}', space=smem, size = 0x200, scoped, tag = 'scoped memory for tpu_custom_call.1']
  %s0 = inlined_call_operand.vmem [shape: bf16[256,128], index: 0, kind: input, shape index: {}]
  %s1 = inlined_call_operand.vmem [shape: s8[256,256], index: 1, kind: input, shape index: {}]
  %s2 = inlined_call_operand.vmem [shape: f32[256,1], index: 2, kind: input, shape index: {}]
  %s3 = inlined_call_operand.<no memory space> [shape: f32[1], index: 3, kind: input, shape index: {}]
  %s4 = inlined_call_operand.hbm [shape: bf16[128,128], index: 4, kind: input, shape index: {}]
  %s5 = inlined_call_operand.vmem [shape: f32[1,128], index: 5, kind: input, shape index: {}]
  %s6 = inlined_call_operand.hbm [shape: bf16[256,128], index: 6, kind: output, shape index: {}]
  %s7 = sld [smem:[#allocation0]]
  $region107: #{tpu_custom_call.1} parent=0
    _
  %s9 = ssub.s32 1, %s7
  %s10 = scalar_select 0, %s9, %s7
  %11 = sst [smem:[#allocation3]] %s3
  $region1: #{tpu_custom_call.1} parent=0
    #allocation4 [shape = 'u8[32768]{0}', space=vmem, size = 0x8000, scoped, tag = 'input window, operand 1']
    #allocation5 [shape = 'u8[32768]{0}', space=vmem, size = 0x8000, scoped, tag = 'input window, operand 4, single buffered']
    #allocation6 [shape = 's32[2]{0}', space=sflag, size = 0x8, scoped, tag = 'scoped memory for tpu_custom_call.1']
    #allocation7 [shape = 's32[2]{0}', space=sflag, size = 0x8, scoped, tag = 'scoped memory for tpu_custom_call.1']
    #allocation8 [shape = 'u8[65536]{0}', space=vmem, size = 0x10000, scoped, tag = 'output window, operand 0']
    %12 = vsyncpa [#allocation6], 0
    %13 = vsyncpa [#allocation7], 0
    %s14 = scalar_lea.sflag [#allocation7], 1
    %15 = vsyncpa %s14, 0
    loop: start=0, step=1, limit=6
    $region2: #{tpu_custom_call.1} parent=1 // loop_pre_header
      _
    $region3: #{tpu_custom_call.1} parent=1 // loop_header
      %s17 = sphi 0, %s21
      %p18 = scmp.ge.s32.totalorder %s17, 6
      %s24 = sphi 0, %s36
      %s25 = sphi 0, %s32
      %s26 = sphi 0, %s24
      %s27 = sphi 0, %s25
      %s28 = sphi 0, %s26
      %s29 = sphi 0, %s27
      %s37 = sphi 0, %s37
      %s39 = sphi 0, %s37
      %s40 = sphi 0, %s39
      %s54 = sphi 0, %s40
      %s62 = sphi 0, %s64
      %s65 = sphi 0, %s62
      %s66 = sphi 0, %s65
      %s82 = sphi 0, %s66
      %s86 = sphi 0, %s86
      %s88 = sphi 0, %s86
      %s89 = sphi 0, %s88
      %s103 = sphi 0, %s89
      %s107 = sphi 0, %s107
      %s109 = sphi 0, %s107
      %s110 = sphi 0, %s109
      %s124 = sphi 0, %s110
      %s128 = sphi 0, %s128
      %s130 = sphi 0, %s128
      %s131 = sphi 0, %s130
      %s145 = sphi 0, %s131
      %s149 = sphi 0, %s149
      %s151 = sphi 0, %s149
      %s152 = sphi 0, %s151
      %s166 = sphi 0, %s152
      %s172 = sphi 0, %s174
      %s175 = sphi 0, %s172
      %s176 = sphi 0, %s175
      %s192 = sphi 0, %s176
    $region4: #{tpu_custom_call.1} parent=1 // loop_header_branch
      %20 = sbr.rel (%p18) target = $region8
    $region5: #{tpu_custom_call.1} parent=1 // loop_body
      %s22 = ssub.s32 %s17, 1
      %s23 = ssub.s32 %s17, 2
      %s30 = sadd.s32 1, %s25
      %p31 = scmp.ge.s32.totalorder %s30, 2
      %s32 = scalar_select %p31, 0, %s30
      %s33 = sadd.s32 1, %s24
      %s34 = scalar_select %p31, %s33, %s24
      %p35 = scmp.ge.s32.totalorder %s34, 2
      %s36 = scalar_select %p35, 0, %s34
      %s38 = sadd.s32 %s37, 1
      %p41 = scmp.eq.s32.totalorder %s17, 3
      %p42 = scmp.ne.s32.totalorder %s37, %s39
      %p43 = scmp.eq.s32.totalorder %s17, 0
      %p44 = por %p42, %p43
      %p45 = scmp.ne.s32.totalorder %s37, %s39
      %p46 = scmp.eq.s32.totalorder %s22, 3
      %p47 = por %p45, %p46
      %p48 = scmp.ne.s32.totalorder %s39, %s40
      %p49 = scmp.eq.s32.totalorder %s22, 0
      %p50 = por %p48, %p49
      %p51 = scmp.ne.s32.totalorder %s39, %s40
      %p52 = scmp.eq.s32.totalorder %s23, 3
      %p53 = por %p51, %p52
      %p55 = scmp.ne.s32.totalorder %s40, %s54
      %p56 = scmp.eq.s32.totalorder %s23, 0
      %p57 = por %p55, %p56
      %s58 = ssub.s32 %s24, %s36
      %s59 = ssub.s32 %s25, %s32
      %s60 = sor.u32 %s58, %s59
      %p61 = scmp.eq.s32.totalorder %s60, 0
      %s63 = sadd.s32 %s62, 1
      %s64 = scalar_select %p61, %s62, %s63
      %p67 = pneg %p61
      %p68 = scmp.eq.s32.totalorder %s17, 3
      %p69 = por %p67, %p68
      %p70 = scmp.ne.s32.totalorder %s62, %s65
      %p71 = scmp.eq.s32.totalorder %s17, 0
      %p72 = por %p70, %p71
      %p73 = scmp.ne.s32.totalorder %s62, %s65
      %p74 = scmp.eq.s32.totalorder %s22, 3
      %p75 = por %p73, %p74
      %p76 = scmp.ne.s32.totalorder %s65, %s66
      %p77 = scmp.eq.s32.totalorder %s22, 0
      %p78 = por %p76, %p77
      %p79 = scmp.ne.s32.totalorder %s65, %s66
      %p80 = scmp.eq.s32.totalorder %s23, 3
      %p81 = por %p79, %p80
      %p83 = scmp.ne.s32.totalorder %s66, %s82
      %p84 = scmp.eq.s32.totalorder %s23, 0
      %p85 = por %p83, %p84
      %s87 = sadd.s32 %s86, 1
      %p90 = scmp.eq.s32.totalorder %s17, 3
      %p91 = scmp.ne.s32.totalorder %s86, %s88
      %p92 = scmp.eq.s32.totalorder %s17, 0
      %p93 = por %p91, %p92
      %p94 = scmp.ne.s32.totalorder %s86, %s88
      %p95 = scmp.eq.s32.totalorder %s22, 3
      %p96 = por %p94, %p95
      %p97 = scmp.ne.s32.totalorder %s88, %s89
      %p98 = scmp.eq.s32.totalorder %s22, 0
      %p99 = por %p97, %p98
      %p100 = scmp.ne.s32.totalorder %s88, %s89
      %p101 = scmp.eq.s32.totalorder %s23, 3
      %p102 = por %p100, %p101
      %p104 = scmp.ne.s32.totalorder %s89, %s103
      %p105 = scmp.eq.s32.totalorder %s23, 0
      %p106 = por %p104, %p105
      %s108 = sadd.s32 %s107, 1
      %p111 = scmp.eq.s32.totalorder %s17, 3
      %p112 = scmp.ne.s32.totalorder %s107, %s109
      %p113 = scmp.eq.s32.totalorder %s17, 0
      %p114 = por %p112, %p113
      %p115 = scmp.ne.s32.totalorder %s107, %s109
      %p116 = scmp.eq.s32.totalorder %s22, 3
      %p117 = por %p115, %p116
      %p118 = scmp.ne.s32.totalorder %s109, %s110
      %p119 = scmp.eq.s32.totalorder %s22, 0
      %p120 = por %p118, %p119
      %p121 = scmp.ne.s32.totalorder %s109, %s110
      %p122 = scmp.eq.s32.totalorder %s23, 3
      %p123 = por %p121, %p122
      %p125 = scmp.ne.s32.totalorder %s110, %s124
      %p126 = scmp.eq.s32.totalorder %s23, 0
      %p127 = por %p125, %p126
      %s129 = sadd.s32 %s128, 1
      %p132 = scmp.eq.s32.totalorder %s17, 3
      %p133 = scmp.ne.s32.totalorder %s128, %s130
      %p134 = scmp.eq.s32.totalorder %s17, 0
      %p135 = por %p133, %p134
      %p136 = scmp.ne.s32.totalorder %s128, %s130
      %p137 = scmp.eq.s32.totalorder %s22, 3
      %p138 = por %p136, %p137
      %p139 = scmp.ne.s32.totalorder %s130, %s131
      %p140 = scmp.eq.s32.totalorder %s22, 0
      %p141 = por %p139, %p140
      %p142 = scmp.ne.s32.totalorder %s130, %s131
      %p143 = scmp.eq.s32.totalorder %s23, 3
      %p144 = por %p142, %p143
      %p146 = scmp.ne.s32.totalorder %s131, %s145
      %p147 = scmp.eq.s32.totalorder %s23, 0
      %p148 = por %p146, %p147
      %s150 = sadd.s32 %s149, 1
      %p153 = scmp.eq.s32.totalorder %s17, 3
      %p154 = scmp.ne.s32.totalorder %s149, %s151
      %p155 = scmp.eq.s32.totalorder %s17, 0
      %p156 = por %p154, %p155
      %p157 = scmp.ne.s32.totalorder %s149, %s151
      %p158 = scmp.eq.s32.totalorder %s22, 3
      %p159 = por %p157, %p158
      %p160 = scmp.ne.s32.totalorder %s151, %s152
      %p161 = scmp.eq.s32.totalorder %s22, 0
      %p162 = por %p160, %p161
      %p163 = scmp.ne.s32.totalorder %s151, %s152
      %p164 = scmp.eq.s32.totalorder %s23, 3
      %p165 = por %p163, %p164
      %p167 = scmp.ne.s32.totalorder %s152, %s166
      %p168 = scmp.eq.s32.totalorder %s23, 0
      %p169 = por %p167, %p168
      %s170 = ssub.s32 %s24, %s36
      %p171 = scmp.eq.s32.totalorder %s170, 0
      %s173 = sadd.s32 %s172, 1
      %s174 = scalar_select %p171, %s172, %s173
      %p177 = pneg %p171
      %p178 = scmp.eq.s32.totalorder %s17, 3
      %p179 = por %p177, %p178
      %p180 = scmp.ne.s32.totalorder %s172, %s175
      %p181 = scmp.eq.s32.totalorder %s17, 0
      %p182 = por %p180, %p181
      %p183 = scmp.ne.s32.totalorder %s172, %s175
      %p184 = scmp.eq.s32.totalorder %s22, 3
      %p185 = por %p183, %p184
      %p186 = scmp.ne.s32.totalorder %s175, %s176
      %p187 = scmp.eq.s32.totalorder %s22, 0
      %p188 = por %p186, %p187
      %p189 = scmp.ne.s32.totalorder %s175, %s176
      %p190 = scmp.eq.s32.totalorder %s23, 3
      %p191 = por %p189, %p190
      %p193 = scmp.ne.s32.totalorder %s176, %s192
      %p194 = scmp.eq.s32.totalorder %s23, 0
      %p195 = por %p193, %p194
      %p196 = scmp.le.s32.totalorder 1, %s17
      %p197 = scmp.lt.s32.totalorder %s17, 5
      %p198 = pnand %p196, %p197
      %p199 = pneg %p198
      // Predicated region
      $region9: #{tpu_custom_call.1} parent=5 // pred_check
        _
      $region10: #{tpu_custom_call.1} parent=5 // pred_check_branch
        %201 = sbr.rel (%p198) target = $region12
      $region11: #{tpu_custom_call.1} parent=5 // pred_region
        %s202 = ssub.s32 %s17, 1
        // Predicated region
        $region13: #{tpu_custom_call.1} parent=11 // pred_check
          %p203 = pneg %p50
        $region14: #{tpu_custom_call.1} parent=11 // pred_check_branch
          %205 = sbr.rel (%p203) target = $region16
        $region15: #{tpu_custom_call.1} parent=11 // pred_region
          _
        $region16: #{tpu_custom_call.1} parent=11 // pred_fallthru
          _
        // Predicated region
        $region17: #{tpu_custom_call.1} parent=11 // pred_check
          %p206 = pneg %p99
        $region18: #{tpu_custom_call.1} parent=11 // pred_check_branch
          %208 = sbr.rel (%p206) target = $region20
        $region19: #{tpu_custom_call.1} parent=11 // pred_region
          _
        $region20: #{tpu_custom_call.1} parent=11 // pred_fallthru
          _
        // Predicated region
        $region21: #{tpu_custom_call.1} parent=11 // pred_check
          %p209 = pneg %p120
        $region22: #{tpu_custom_call.1} parent=11 // pred_check_branch
          %211 = sbr.rel (%p209) target = $region24
        $region23: #{tpu_custom_call.1} parent=11 // pred_region
          _
        $region24: #{tpu_custom_call.1} parent=11 // pred_fallthru
          _
        // Predicated region
        $region25: #{tpu_custom_call.1} parent=11 // pred_check
          %p212 = pneg %p141
        $region26: #{tpu_custom_call.1} parent=11 // pred_check_branch
          %214 = sbr.rel (%p212) target = $region28
        $region27: #{tpu_custom_call.1} parent=11 // pred_region
          %s216 = ssub.s32 1024, 1024
          %217 = vsyncadd [#allocation6], %s216
          %s218 = sshll.u32 [#allocation5], 4
          %s219 = int_to_ptr.vmem [resolvable:$true] %s218
          %224 = dma.hbm_to_vmem [thread:$0]  %s4, 1024, %s219, [#allocation6], 64, 64, 4
        $region28: #{tpu_custom_call.1} parent=11 // pred_fallthru
          _
        // Predicated region
        $region29: #{tpu_custom_call.1} parent=11 // pred_check
          %p225 = pneg %p162
        $region30: #{tpu_custom_call.1} parent=11 // pred_check_branch
          %227 = sbr.rel (%p225) target = $region32
        $region31: #{tpu_custom_call.1} parent=11 // pred_region
          _
        $region32: #{tpu_custom_call.1} parent=11 // pred_fallthru
          _
      $region12: #{tpu_custom_call.1} parent=5 // pred_fallthru
        _
      %p228 = scmp.lt.s32.totalorder %s17, 4
      // Predicated region
      $region33: #{tpu_custom_call.1} parent=5 // pred_check
        %p229 = pneg %p228
      $region34: #{tpu_custom_call.1} parent=5 // pred_check_branch
        %231 = sbr.rel (%p229) target = $region36
      $region35: #{tpu_custom_call.1} parent=5 // pred_region
        // Predicated region
        $region37: #{tpu_custom_call.1} parent=35 // pred_check
          %p232 = pneg %p72
        $region38: #{tpu_custom_call.1} parent=35 // pred_check_branch
          %234 = sbr.rel (%p232) target = $region40
        $region39: #{tpu_custom_call.1} parent=35 // pred_region
          %s235 = sand.u32 %s62, 1
          %s236 = sand.u32 %s62, 1
          %s237 = smul.addr %s236, 32
          %s238 = scalar_lea.vmem [#allocation4], %s237
          %s239 = smul.u32 4, %s24
          %s240 = smul.addr %s239, 2
          %s241 = sadd.s32 %s25, %s240
          %s242 = smul.addr %s241, 8
          %s243 = scalar_lea.vmem %s1, %s242
          // Predicated region
          $region41: #{tpu_custom_call.1} parent=39 // pred_check
            _
          $region42: #{tpu_custom_call.1} parent=39 // pred_check_branch
            %245 = sbr.rel (0) target = $region44
          $region43: #{tpu_custom_call.1} parent=39 // pred_region
            // Predicated region
            $region45: #{tpu_custom_call.1} parent=43 // pred_check
              _
            $region46: #{tpu_custom_call.1} parent=43 // pred_check_branch
              %247 = sbr.rel (0) target = $region48
            $region47: #{tpu_custom_call.1} parent=43 // pred_region
              // Predicated region
              $region60: #{tpu_custom_call.1} parent=47 // pred_check
                _
              $region61: #{tpu_custom_call.1} parent=47 // pred_check_branch
                %269 = sbr.rel (0) target = $region63
              $region62: #{tpu_custom_call.1} parent=47 // pred_region
                loop: start=0, step=1, limit=1
                $region64: #{tpu_custom_call.1} parent=62 // loop_pre_header
                  _
                $region65: #{tpu_custom_call.1} parent=62 // loop_header
                  %s271 = sphi 0, %s275
                  %p272 = scmp.ge.s32.totalorder %s271, 1
                  %s276 = sphi %s243, %s243
                  %s277 = sphi %s238, %s238
                $region66: #{tpu_custom_call.1} parent=62 // loop_header_branch
                  %274 = sbr.rel (%p272) target = $region70
                $region67: #{tpu_custom_call.1} parent=62 // loop_body
                  %v278 = vld [vmem:[%s276] sm:$0xff]
                  %279 = vst [vmem:[%s277] sm:$0xff] %v278
                  %v280 = vld [vmem:[%s276 + $0x10] sm:$0xff]
                  %281 = vst [vmem:[%s277 + $0x8] sm:$0xff] %v280
                  %v282 = vld [vmem:[%s276 + $0x20] sm:$0xff]
                  %283 = vst [vmem:[%s277 + $0x10] sm:$0xff] %v282
                  %v284 = vld [vmem:[%s276 + $0x30] sm:$0xff]
                  %285 = vst [vmem:[%s277 + $0x18] sm:$0xff] %v284
                $region68: #{tpu_custom_call.1} parent=62 // loop_footer
                  %s275 = sadd.s32 1, %s271
                $region69: #{tpu_custom_call.1} parent=62 // loop_footer_branch
                  %270 = sbr.rel target = $region65
                $region70: #{tpu_custom_call.1} parent=62 // loop_exit
                  _
              $region63: #{tpu_custom_call.1} parent=47 // pred_fallthru
                _
              // Predicated region
              $region71: #{tpu_custom_call.1} parent=47 // pred_check
                _
              $region72: #{tpu_custom_call.1} parent=47 // pred_check_branch
                %287 = sbr.rel target = $region74
              $region73: #{tpu_custom_call.1} parent=47 // pred_region
                _
              $region74: #{tpu_custom_call.1} parent=47 // pred_fallthru
                _
            $region48: #{tpu_custom_call.1} parent=43 // pred_fallthru
              _
            // Predicated region
            $region49: #{tpu_custom_call.1} parent=43 // pred_check
              _
            $region50: #{tpu_custom_call.1} parent=43 // pred_check_branch
              %249 = sbr.rel target = $region52
            $region51: #{tpu_custom_call.1} parent=43 // pred_region
              %s251 = ssub.s32 256, 1
              loop: start=0, step=1, limit=1
              $region53: #{tpu_custom_call.1} parent=51 // loop_pre_header
                _
              $region54: #{tpu_custom_call.1} parent=51 // loop_header
                %s253 = sphi 0, %s257
                %p254 = scmp.ge.s32.totalorder %s253, 1
                %s258 = sphi %s243, %s243
                %s259 = sphi %s238, %s238
              $region55: #{tpu_custom_call.1} parent=51 // loop_header_branch
                %256 = sbr.rel (%p254) target = $region59
              $region56: #{tpu_custom_call.1} parent=51 // loop_body
                %v260 = vld [vmem:[%s258] sm:%s251]
                %261 = vst [vmem:[%s259] sm:%s251] %v260
                %v262 = vld [vmem:[%s258 + $0x10] sm:%s251]
                %263 = vst [vmem:[%s259 + $0x8] sm:%s251] %v262
                %v264 = vld [vmem:[%s258 + $0x20] sm:%s251]
                %265 = vst [vmem:[%s259 + $0x10] sm:%s251] %v264
                %v266 = vld [vmem:[%s258 + $0x30] sm:%s251]
                %267 = vst [vmem:[%s259 + $0x18] sm:%s251] %v266
              $region57: #{tpu_custom_call.1} parent=51 // loop_footer
                %s257 = sadd.s32 1, %s253
              $region58: #{tpu_custom_call.1} parent=51 // loop_footer_branch
                %252 = sbr.rel target = $region54
              $region59: #{tpu_custom_call.1} parent=51 // loop_exit
                _
            $region52: #{tpu_custom_call.1} parent=43 // pred_fallthru
              _
          $region44: #{tpu_custom_call.1} parent=39 // pred_fallthru
            _
          %288 = vnop
        $region40: #{tpu_custom_call.1} parent=35 // pred_fallthru
          _
      $region36: #{tpu_custom_call.1} parent=5 // pred_fallthru
        _
      %p289 = scmp.le.s32.totalorder 1, %s17
      %p290 = scmp.lt.s32.totalorder %s17, 5
      %p291 = pnand %p289, %p290
      %p292 = pneg %p291
      // Predicated region
      $region75: #{tpu_custom_call.1} parent=5 // pred_check
        _
      $region76: #{tpu_custom_call.1} parent=5 // pred_check_branch
        %294 = sbr.rel (%p291) target = $region78
      $region77: #{tpu_custom_call.1} parent=5 // pred_region
        %s295 = ssub.s32 %s17, 1
        %s296 = sand.u32 %s65, 1
        %s297 = sand.u32 %s65, 1
        %s298 = smul.addr %s297, 32
        %s299 = scalar_lea.vmem [#allocation4], %s298
        // Predicated region
        $region79: #{tpu_custom_call.1} parent=77 // pred_check
          %p300 = pneg %p78
        $region80: #{tpu_custom_call.1} parent=77 // pred_check_branch
          %302 = sbr.rel (%p300) target = $region82
        $region81: #{tpu_custom_call.1} parent=77 // pred_region
          _
        $region82: #{tpu_custom_call.1} parent=77 // pred_fallthru
          _
        // Predicated region
        $region83: #{tpu_custom_call.1} parent=77 // pred_check
          %p303 = pneg %p141
        $region84: #{tpu_custom_call.1} parent=77 // pred_check_branch
          %305 = sbr.rel (%p303) target = $region86
        $region85: #{tpu_custom_call.1} parent=77 // pred_region
          %306 = dma.done [#allocation6], 1024
        $region86: #{tpu_custom_call.1} parent=77 // pred_fallthru
          _
        %p307 = pneg %p50
        %p308 = pneg %p47
        %s309 = sand.u32 %s65, 1
        %s310 = sand.u32 %s65, 1
        %s311 = smul.addr %s310, 32
        %s312 = scalar_lea.vmem [#allocation4], %s311
        %p313 = pneg %p78
        %p314 = pneg %p75
        %p315 = pneg %p99
        %p316 = pneg %p96
        %p317 = pneg %p120
        %p318 = pneg %p117
        %p319 = pneg %p141
        %p320 = pneg %p138
        %p321 = pneg %p162
        %p322 = pneg %p159
        %p323 = pneg %p188
        %p324 = pneg %p185
        %s325 = sand.u32 %s175, 1
        %s326 = scalar_lea.sflag [#allocation7], %s325
        %s327 = sand.u32 %s175, 1
        %s328 = smul.addr %s327, 64
        %s329 = scalar_lea.vmem [#allocation8], %s328
        %s330 = smul.u32 4, %s26
        %s331 = smul.u32 16, %s26
        %p333 = scmp.eq.s32.totalorder %s27, 0
        // Predicated region
        $region87: #{tpu_custom_call.1} parent=77 // pred_check
          %p334 = pneg %p333
        $region88: #{tpu_custom_call.1} parent=77 // pred_check_branch
          %336 = sbr.rel (%p334) target = $region90
        $region89: #{tpu_custom_call.1} parent=77 // pred_region
          %337 = vst [vmem:[#allocation2] sm:$0xff] 0.0
          %338 = vst [vmem:[#allocation2 + $0x8] sm:$0xff] 0.0
          %339 = vst [vmem:[#allocation2 + $0x10] sm:$0xff] 0.0
          %340 = vst [vmem:[#allocation2 + $0x18] sm:$0xff] 0.0
          %341 = vst [vmem:[#allocation2 + $0x20] sm:$0xff] 0.0
          %342 = vst [vmem:[#allocation2 + $0x28] sm:$0xff] 0.0
          %343 = vst [vmem:[#allocation2 + $0x30] sm:$0xff] 0.0
          %344 = vst [vmem:[#allocation2 + $0x38] sm:$0xff] 0.0
          %345 = vst [vmem:[#allocation2 + $0x40] sm:$0xff] 0.0
          %346 = vst [vmem:[#allocation2 + $0x48] sm:$0xff] 0.0
          %347 = vst [vmem:[#allocation2 + $0x50] sm:$0xff] 0.0
          %348 = vst [vmem:[#allocation2 + $0x58] sm:$0xff] 0.0
          %349 = vst [vmem:[#allocation2 + $0x60] sm:$0xff] 0.0
          %350 = vst [vmem:[#allocation2 + $0x68] sm:$0xff] 0.0
          %351 = vst [vmem:[#allocation2 + $0x70] sm:$0xff] 0.0
          %352 = vst [vmem:[#allocation2 + $0x78] sm:$0xff] 0.0
        $region90: #{tpu_custom_call.1} parent=77 // pred_fallthru
          _
        %s353 = smul.u32 %s27, 128
        %s354 = sshra.s32 %s353, 3
        %s355 = sand.u32 %s353, 7
        %s356 = smul.addr %s354, 4
        %s357 = scalar_lea.vmem %s0, %s356
        %v358 = vld [vmem:[%s357] sm:$0xf]
        %v359 = vld [vmem:[%s357 + $0x4] sm:$0xf]
        %v360 = vld [vmem:[%s357 + $0x8] sm:$0xf]
        %v361 = vld [vmem:[%s357 + $0xc] sm:$0xf]
        %v362 = vld [vmem:[%s357 + $0x10] sm:$0xf]
        %v363 = vld [vmem:[%s357 + $0x14] sm:$0xf]
        %v364 = vld [vmem:[%s357 + $0x18] sm:$0xf]
        %v365 = vld [vmem:[%s357 + $0x1c] sm:$0xf]
        %v366 = vld [vmem:[%s357 + $0x20] sm:$0xf]
        %v367 = vld [vmem:[%s357 + $0x24] sm:$0xf]
        %v368 = vld [vmem:[%s357 + $0x28] sm:$0xf]
        %v369 = vld [vmem:[%s357 + $0x2c] sm:$0xf]
        %v370 = vld [vmem:[%s357 + $0x30] sm:$0xf]
        %v371 = vld [vmem:[%s357 + $0x34] sm:$0xf]
        %v372 = vld [vmem:[%s357 + $0x38] sm:$0xf]
        %v373 = vld [vmem:[%s357 + $0x3c] sm:$0xf]
        %v374 = vld [vmem:[%s299] sm:$0xff]
        %v375 = vld [vmem:[%s299 + $0x8] sm:$0xff]
        %v376 = vld [vmem:[%s299 + $0x10] sm:$0xff]
        %v377 = vld [vmem:[%s299 + $0x18] sm:$0xff]
        %v378 = vunpack.c.l.s8.bf16 %v374
        %v379 = vunpack.c.h.s8.bf16 %v374
        %v380 = vunpack.c.l.s8.bf16 %v375
        %v381 = vunpack.c.h.s8.bf16 %v375
        %v382 = vunpack.c.l.s8.bf16 %v376
        %v383 = vunpack.c.h.s8.bf16 %v376
        %v384 = vunpack.c.l.s8.bf16 %v377
        %v385 = vunpack.c.h.s8.bf16 %v377
        %v386 = vld [vmem:[#allocation2] sm:$0xff]
        %v387 = vld [vmem:[#allocation2 + $0x8] sm:$0xff]
        %v388 = vld [vmem:[#allocation2 + $0x10] sm:$0xff]
        %v389 = vld [vmem:[#allocation2 + $0x18] sm:$0xff]
        %v390 = vld [vmem:[#allocation2 + $0x20] sm:$0xff]
        %v391 = vld [vmem:[#allocation2 + $0x28] sm:$0xff]
        %v392 = vld [vmem:[#allocation2 + $0x30] sm:$0xff]
        %v393 = vld [vmem:[#allocation2 + $0x38] sm:$0xff]
        %v394 = vld [vmem:[#allocation2 + $0x40] sm:$0xff]
        %v395 = vld [vmem:[#allocation2 + $0x48] sm:$0xff]
        %v396 = vld [vmem:[#allocation2 + $0x50] sm:$0xff]
        %v397 = vld [vmem:[#allocation2 + $0x58] sm:$0xff]
        %v398 = vld [vmem:[#allocation2 + $0x60] sm:$0xff]
        %v399 = vld [vmem:[#allocation2 + $0x68] sm:$0xff]
        %v400 = vld [vmem:[#allocation2 + $0x70] sm:$0xff]
        %v401 = vld [vmem:[#allocation2 + $0x78] sm:$0xff]
        %v418 = vunpack.c.l.b16 %v358
        %v419 = vunpack.c.l.b16 %v359
        %v420 = vunpack.c.l.b16 %v360
        %v421 = vunpack.c.l.b16 %v361
        %v422 = vunpack.c.l.b16 %v362
        %v423 = vunpack.c.l.b16 %v363
        %v424 = vunpack.c.l.b16 %v364
        %v425 = vunpack.c.l.b16 %v365
        %v426 = vunpack.c.l.b16 %v366
        %v427 = vunpack.c.l.b16 %v367
        %v428 = vunpack.c.l.b16 %v368
        %v429 = vunpack.c.l.b16 %v369
        %v430 = vunpack.c.l.b16 %v370
        %v431 = vunpack.c.l.b16 %v371
        %v432 = vunpack.c.l.b16 %v372
        %v433 = vunpack.c.l.b16 %v373
        %v434 = vpack.c.b16 %v419, %v418
        %v435 = vpack.c.b16 %v421, %v420
        %v436 = vpack.c.b16 %v423, %v422
        %v437 = vpack.c.b16 %v425, %v424
        %v438 = vpack.c.b16 %v427, %v426
        %v439 = vpack.c.b16 %v429, %v428
        %v440 = vpack.c.b16 %v431, %v430
        %v441 = vpack.c.b16 %v433, %v432
        %450 = vmatprep.subr.bf16.mxu0 0
        %451 = vmatpush1.bf16.msra.mxu0 %v441
        %452 = vmatprep.subr.bf16.mxu0 0
        %453 = vmatpush1.bf16.msra.mxu0 %v440
        %454 = vmatprep.subr.bf16.mxu0 0
        %455 = vmatpush1.bf16.msra.mxu0 %v439
        %456 = vmatprep.subr.bf16.mxu0 0
        %457 = vmatpush1.bf16.msra.mxu0 %v438
        %458 = vmatprep.subr.bf16.mxu0 0
        %459 = vmatpush1.bf16.msra.mxu0 %v437
        %460 = vmatprep.subr.bf16.mxu0 0
        %461 = vmatpush1.bf16.msra.mxu0 %v436
        %462 = vmatprep.subr.bf16.mxu0 0
        %463 = vmatpush1.bf16.msra.mxu0 %v435
        %464 = vmatprep.subr.bf16.mxu0 0
        %465 = vmatpush1.bf16.msra.mxu0 %v434
        %466 = vmatprep.subr.bf16.mxu0 0
        %467 = vmatpush2.bf16.msra.mxu0 0
        %468 = vmatprep.subr.bf16.mxu0 0
        %469 = vmatpush2.bf16.msra.mxu0 0
        %470 = vmatprep.subr.bf16.mxu0 0
        %471 = vmatpush2.bf16.msra.mxu0 0
        %472 = vmatprep.subr.bf16.mxu0 0
        %473 = vmatpush2.bf16.msra.mxu0 0
        %474 = vmatprep.subr.bf16.mxu0 0
        %475 = vmatpush2.bf16.msra.mxu0 0
        %476 = vmatprep.subr.bf16.mxu0 0
        %477 = vmatpush2.bf16.msra.mxu0 0
        %478 = vmatprep.subr.bf16.mxu0 0
        %479 = vmatpush2.bf16.msra.mxu0 0
        %480 = vmatprep.subr.bf16.mxu0 0
        %481 = vmatpush2.bf16.msra.mxu0 0
        %482 = vmatprep.mubr.bf16.mxu0 0
        %483 = vmatmul.mubr.bf16.gmra.mxu0 %v378
        %v484 = vpop.f32.mrf.mxu0
        %v485 = vadd.f32 0.0, %v484
        %v486 = vpop.f32.mrf.mxu0
        %v487 = vpop.f32.mrf.mxu0
        %v488 = vadd.f32 0.0, %v487
        %v489 = vpop.f32.mrf.mxu0
        %490 = vmatprep.mubr.bf16.mxu0 0
        %491 = vmatmul.mubr.bf16.gmra.mxu0 %v379
        %v492 = vpop.f32.mrf.mxu0
        %v493 = vadd.f32 0.0, %v492
        %v494 = vpop.f32.mrf.mxu0
        %v495 = vpop.f32.mrf.mxu0
        %v496 = vadd.f32 0.0, %v495
        %v497 = vpop.f32.mrf.mxu0
        %498 = vmatprep.mubr.bf16.mxu0 0
        %499 = vmatmul.mubr.bf16.gmra.mxu0 %v380
        %v500 = vpop.f32.mrf.mxu0
        %v501 = vadd.f32 0.0, %v500
        %v502 = vpop.f32.mrf.mxu0
        %v503 = vpop.f32.mrf.mxu0
        %v504 = vadd.f32 0.0, %v503
        %v505 = vpop.f32.mrf.mxu0
        %506 = vmatprep.mubr.bf16.mxu0 0
        %507 = vmatmul.mubr.bf16.gmra.mxu0 %v381
        %v508 = vpop.f32.mrf.mxu0
        %v509 = vadd.f32 0.0, %v508
        %v510 = vpop.f32.mrf.mxu0
        %v511 = vpop.f32.mrf.mxu0
        %v512 = vadd.f32 0.0, %v511
        %v513 = vpop.f32.mrf.mxu0
        %514 = vmatprep.mubr.bf16.mxu0 0
        %515 = vmatmul.mubr.bf16.gmra.mxu0 %v382
        %v516 = vpop.f32.mrf.mxu0
        %v517 = vadd.f32 0.0, %v516
        %v518 = vpop.f32.mrf.mxu0
        %v519 = vpop.f32.mrf.mxu0
        %v520 = vadd.f32 0.0, %v519
        %v521 = vpop.f32.mrf.mxu0
        %522 = vmatprep.mubr.bf16.mxu0 0
        %523 = vmatmul.mubr.bf16.gmra.mxu0 %v383
        %v524 = vpop.f32.mrf.mxu0
        %v525 = vadd.f32 0.0, %v524
        %v526 = vpop.f32.mrf.mxu0
        %v527 = vpop.f32.mrf.mxu0
        %v528 = vadd.f32 0.0, %v527
        %v529 = vpop.f32.mrf.mxu0
        %530 = vmatprep.mubr.bf16.mxu0 0
        %531 = vmatmul.mubr.bf16.gmra.mxu0 %v384
        %v532 = vpop.f32.mrf.mxu0
        %v533 = vadd.f32 0.0, %v532
        %v534 = vpop.f32.mrf.mxu0
        %v535 = vpop.f32.mrf.mxu0
        %v536 = vadd.f32 0.0, %v535
        %v537 = vpop.f32.mrf.mxu0
        %538 = vmatprep.mubr.bf16.mxu0 0
        %539 = vmatmul.mubr.bf16.gmra.mxu0 %v385
        %v540 = vpop.f32.mrf.mxu0
        %v541 = vadd.f32 0.0, %v540
        %v542 = vpop.f32.mrf.mxu0
        %v543 = vpop.f32.mrf.mxu0
        %v544 = vadd.f32 0.0, %v543
        %v545 = vpop.f32.mrf.mxu0
        %546 = vdwg.mxu0
        %v547 = vadd.f32 %v386, %v485
        %v548 = vadd.f32 %v387, %v488
        %v549 = vadd.f32 %v388, %v493
        %v550 = vadd.f32 %v389, %v496
        %v551 = vadd.f32 %v390, %v501
        %v552 = vadd.f32 %v391, %v504
        %v553 = vadd.f32 %v392, %v509
        %v554 = vadd.f32 %v393, %v512
        %v555 = vadd.f32 %v394, %v517
        %v556 = vadd.f32 %v395, %v520
        %v557 = vadd.f32 %v396, %v525
        %v558 = vadd.f32 %v397, %v528
        %v559 = vadd.f32 %v398, %v533
        %v560 = vadd.f32 %v399, %v536
        %v561 = vadd.f32 %v400, %v541
        %v562 = vadd.f32 %v401, %v544
        %563 = vst [vmem:[#allocation2] sm:$0xff] %v547
        %564 = vst [vmem:[#allocation2 + $0x8] sm:$0xff] %v548
        %565 = vst [vmem:[#allocation2 + $0x10] sm:$0xff] %v549
        %566 = vst [vmem:[#allocation2 + $0x18] sm:$0xff] %v550
        %567 = vst [vmem:[#allocation2 + $0x20] sm:$0xff] %v551
        %568 = vst [vmem:[#allocation2 + $0x28] sm:$0xff] %v552
        %569 = vst [vmem:[#allocation2 + $0x30] sm:$0xff] %v553
        %570 = vst [vmem:[#allocation2 + $0x38] sm:$0xff] %v554
        %571 = vst [vmem:[#allocation2 + $0x40] sm:$0xff] %v555
        %572 = vst [vmem:[#allocation2 + $0x48] sm:$0xff] %v556
        %573 = vst [vmem:[#allocation2 + $0x50] sm:$0xff] %v557
        %574 = vst [vmem:[#allocation2 + $0x58] sm:$0xff] %v558
        %575 = vst [vmem:[#allocation2 + $0x60] sm:$0xff] %v559
        %576 = vst [vmem:[#allocation2 + $0x68] sm:$0xff] %v560
        %577 = vst [vmem:[#allocation2 + $0x70] sm:$0xff] %v561
        %578 = vst [vmem:[#allocation2 + $0x78] sm:$0xff] %v562
        %p579 = scmp.eq.s32.totalorder %s27, 1
        // Predicated region
        $region91: #{tpu_custom_call.1} parent=77 // pred_check
          %p580 = pneg %p579
        $region92: #{tpu_custom_call.1} parent=77 // pred_check_branch
          %582 = sbr.rel (%p580) target = $region94
        $region93: #{tpu_custom_call.1} parent=77 // pred_region
          %s583 = smul.u32 %s26, 128
          %s584 = sshra.s32 %s583, 3
          %s585 = sand.u32 %s583, 7
          %s586 = smul.addr %s584, 4
          %s587 = scalar_lea.vmem %s0, %s586
          %v588 = vld [vmem:[%s587] sm:$0xf]
          %v589 = vld [vmem:[%s587 + $0x4] sm:$0xf]
          %v590 = vld [vmem:[%s587 + $0x8] sm:$0xf]
          %v591 = vld [vmem:[%s587 + $0xc] sm:$0xf]
          %v592 = vld [vmem:[%s587 + $0x10] sm:$0xf]
          %v593 = vld [vmem:[%s587 + $0x14] sm:$0xf]
          %v594 = vld [vmem:[%s587 + $0x18] sm:$0xf]
          %v595 = vld [vmem:[%s587 + $0x1c] sm:$0xf]
          %v596 = vld [vmem:[%s587 + $0x20] sm:$0xf]
          %v597 = vld [vmem:[%s587 + $0x24] sm:$0xf]
          %v598 = vld [vmem:[%s587 + $0x28] sm:$0xf]
          %v599 = vld [vmem:[%s587 + $0x2c] sm:$0xf]
          %v600 = vld [vmem:[%s587 + $0x30] sm:$0xf]
          %v601 = vld [vmem:[%s587 + $0x34] sm:$0xf]
          %v602 = vld [vmem:[%s587 + $0x38] sm:$0xf]
          %v603 = vld [vmem:[%s587 + $0x3c] sm:$0xf]
          %v604 = vunpack.c.l.bf16 %v588
          %v605 = vunpack.c.l.bf16 %v589
          %v606 = vunpack.c.l.bf16 %v590
          %v607 = vunpack.c.l.bf16 %v591
          %v608 = vunpack.c.l.bf16 %v592
          %v609 = vunpack.c.l.bf16 %v593
          %v610 = vunpack.c.l.bf16 %v594
          %v611 = vunpack.c.l.bf16 %v595
          %v612 = vunpack.c.l.bf16 %v596
          %v613 = vunpack.c.l.bf16 %v597
          %v614 = vunpack.c.l.bf16 %v598
          %v615 = vunpack.c.l.bf16 %v599
          %v616 = vunpack.c.l.bf16 %v600
          %v617 = vunpack.c.l.bf16 %v601
          %v618 = vunpack.c.l.bf16 %v602
          %v619 = vunpack.c.l.bf16 %v603
          %s620 = scalar_lea.vmem %s2, %s583
          %v621 = vld [vmem:[%s620] sm:$0xff]
          %v622 = vld [vmem:[%s620 + $0x8] sm:$0xff]
          %v623 = vld [vmem:[%s620 + $0x10] sm:$0xff]
          %v624 = vld [vmem:[%s620 + $0x18] sm:$0xff]
          %v625 = vld [vmem:[%s620 + $0x20] sm:$0xff]
          %v626 = vld [vmem:[%s620 + $0x28] sm:$0xff]
          %v627 = vld [vmem:[%s620 + $0x30] sm:$0xff]
          %v628 = vld [vmem:[%s620 + $0x38] sm:$0xff]
          %v629 = vld [vmem:[%s620 + $0x40] sm:$0xff]
          %v630 = vld [vmem:[%s620 + $0x48] sm:$0xff]
          %v631 = vld [vmem:[%s620 + $0x50] sm:$0xff]
          %v632 = vld [vmem:[%s620 + $0x58] sm:$0xff]
          %v633 = vld [vmem:[%s620 + $0x60] sm:$0xff]
          %v634 = vld [vmem:[%s620 + $0x68] sm:$0xff]
          %v635 = vld [vmem:[%s620 + $0x70] sm:$0xff]
          %v636 = vld [vmem:[%s620 + $0x78] sm:$0xff]
          %s637 = sld [smem:[#allocation3]]
          %s638 = sadd.f32 %s637, 1.0
          %v639 = vstv %s638
          %v640 = vmul.f32 %v639, %v604
          %v641 = vmul.f32 %v639, %v605
          %v642 = vmul.f32 %v639, %v606
          %v643 = vmul.f32 %v639, %v607
          %v644 = vmul.f32 %v639, %v608
          %v645 = vmul.f32 %v639, %v609
          %v646 = vmul.f32 %v639, %v610
          %v647 = vmul.f32 %v639, %v611
          %v648 = vmul.f32 %v639, %v612
          %v649 = vmul.f32 %v639, %v613
          %v650 = vmul.f32 %v639, %v614
          %v651 = vmul.f32 %v639, %v615
          %v652 = vmul.f32 %v639, %v616
          %v653 = vmul.f32 %v639, %v617
          %v654 = vmul.f32 %v639, %v618
          %v655 = vmul.f32 %v639, %v619
          %v656 = vld [vmem:[#allocation2] sm:$0xff]
          %v657 = vld [vmem:[#allocation2 + $0x8] sm:$0xff]
          %v658 = vld [vmem:[#allocation2 + $0x10] sm:$0xff]
          %v659 = vld [vmem:[#allocation2 + $0x18] sm:$0xff]
          %v660 = vld [vmem:[#allocation2 + $0x20] sm:$0xff]
          %v661 = vld [vmem:[#allocation2 + $0x28] sm:$0xff]
          %v662 = vld [vmem:[#allocation2 + $0x30] sm:$0xff]
          %v663 = vld [vmem:[#allocation2 + $0x38] sm:$0xff]
          %v664 = vld [vmem:[#allocation2 + $0x40] sm:$0xff]
          %v665 = vld [vmem:[#allocation2 + $0x48] sm:$0xff]
          %v666 = vld [vmem:[#allocation2 + $0x50] sm:$0xff]
          %v667 = vld [vmem:[#allocation2 + $0x58] sm:$0xff]
          %v668 = vld [vmem:[#allocation2 + $0x60] sm:$0xff]
          %v669 = vld [vmem:[#allocation2 + $0x68] sm:$0xff]
          %v670 = vld [vmem:[#allocation2 + $0x70] sm:$0xff]
          %v671 = vld [vmem:[#allocation2 + $0x78] sm:$0xff]
          %673 = vset.pattern.permute.xlu0 0
          %674 = vperm.xlu0 %673, %v621
          %v675 = vpop.permute.xlu0 %674
          %678 = vset.pattern.permute.xlu0 0
          %679 = vperm.xlu0 %678, %v622
          %v680 = vpop.permute.xlu0 %679
          %683 = vset.pattern.permute.xlu0 0
          %684 = vperm.xlu0 %683, %v623
          %v685 = vpop.permute.xlu0 %684
          %688 = vset.pattern.permute.xlu0 0
          %689 = vperm.xlu0 %688, %v624
          %v690 = vpop.permute.xlu0 %689
          %693 = vset.pattern.permute.xlu0 0
          %694 = vperm.xlu0 %693, %v625
          %v695 = vpop.permute.xlu0 %694
          %698 = vset.pattern.permute.xlu0 0
          %699 = vperm.xlu0 %698, %v626
          %v700 = vpop.permute.xlu0 %699
          %703 = vset.pattern.permute.xlu0 0
          %704 = vperm.xlu0 %703, %v627
          %v705 = vpop.permute.xlu0 %704
          %708 = vset.pattern.permute.xlu0 0
          %709 = vperm.xlu0 %708, %v628
          %v710 = vpop.permute.xlu0 %709
          %713 = vset.pattern.permute.xlu0 0
          %714 = vperm.xlu0 %713, %v629
          %v715 = vpop.permute.xlu0 %714
          %718 = vset.pattern.permute.xlu0 0
          %719 = vperm.xlu0 %718, %v630
          %v720 = vpop.permute.xlu0 %719
          %723 = vset.pattern.permute.xlu0 0
          %724 = vperm.xlu0 %723, %v631
          %v725 = vpop.permute.xlu0 %724
          %728 = vset.pattern.permute.xlu0 0
          %729 = vperm.xlu0 %728, %v632
          %v730 = vpop.permute.xlu0 %729
          %733 = vset.pattern.permute.xlu0 0
          %734 = vperm.xlu0 %733, %v633
          %v735 = vpop.permute.xlu0 %734
          %738 = vset.pattern.permute.xlu0 0
          %739 = vperm.xlu0 %738, %v634
          %v740 = vpop.permute.xlu0 %739
          %743 = vset.pattern.permute.xlu0 0
          %744 = vperm.xlu0 %743, %v635
          %v745 = vpop.permute.xlu0 %744
          %748 = vset.pattern.permute.xlu0 0
          %749 = vperm.xlu0 %748, %v636
          %v750 = vpop.permute.xlu0 %749
          %v752 = vmul.f32 %v675, %v656
          %v753 = vmul.f32 %v680, %v657
          %v754 = vmul.f32 %v685, %v658
          %v755 = vmul.f32 %v690, %v659
          %v756 = vmul.f32 %v695, %v660
          %v757 = vmul.f32 %v700, %v661
          %v758 = vmul.f32 %v705, %v662
          %v759 = vmul.f32 %v710, %v663
          %v760 = vmul.f32 %v715, %v664
          %v761 = vmul.f32 %v720, %v665
          %v762 = vmul.f32 %v725, %v666
          %v763 = vmul.f32 %v730, %v667
          %v764 = vmul.f32 %v735, %v668
          %v765 = vmul.f32 %v740, %v669
          %v766 = vmul.f32 %v745, %v670
          %v767 = vmul.f32 %v750, %v671
          %v768 = vadd.f32 %v640, %v752
          %v769 = vadd.f32 %v641, %v753
          %v770 = vadd.f32 %v642, %v754
          %v771 = vadd.f32 %v643, %v755
          %v772 = vadd.f32 %v644, %v756
          %v773 = vadd.f32 %v645, %v757
          %v774 = vadd.f32 %v646, %v758
          %v775 = vadd.f32 %v647, %v759
          %v776 = vadd.f32 %v648, %v760
          %v777 = vadd.f32 %v649, %v761
          %v778 = vadd.f32 %v650, %v762
          %v779 = vadd.f32 %v651, %v763
          %v780 = vadd.f32 %v652, %v764
          %v781 = vadd.f32 %v653, %v765
          %v782 = vadd.f32 %v654, %v766
          %v783 = vadd.f32 %v655, %v767
          %v784 = vpack.c.bf16 %v769, %v768
          %v785 = vpack.c.bf16 %v771, %v770
          %v786 = vpack.c.bf16 %v773, %v772
          %v787 = vpack.c.bf16 %v775, %v774
          %v788 = vpack.c.bf16 %v777, %v776
          %v789 = vpack.c.bf16 %v779, %v778
          %v790 = vpack.c.bf16 %v781, %v780
          %v791 = vpack.c.bf16 %v783, %v782
          %v792 = vld [vmem:[#allocation5] sm:$0xf]
          %v793 = vld [vmem:[#allocation5 + $0x4] sm:$0xf]
          %v794 = vld [vmem:[#allocation5 + $0x8] sm:$0xf]
          %v795 = vld [vmem:[#allocation5 + $0xc] sm:$0xf]
          %v796 = vld [vmem:[#allocation5 + $0x10] sm:$0xf]
          %v797 = vld [vmem:[#allocation5 + $0x14] sm:$0xf]
          %v798 = vld [vmem:[#allocation5 + $0x18] sm:$0xf]
          %v799 = vld [vmem:[#allocation5 + $0x1c] sm:$0xf]
          %v800 = vld [vmem:[#allocation5 + $0x20] sm:$0xf]
          %v801 = vld [vmem:[#allocation5 + $0x24] sm:$0xf]
          %v802 = vld [vmem:[#allocation5 + $0x28] sm:$0xf]
          %v803 = vld [vmem:[#allocation5 + $0x2c] sm:$0xf]
          %v804 = vld [vmem:[#allocation5 + $0x30] sm:$0xf]
          %v805 = vld [vmem:[#allocation5 + $0x34] sm:$0xf]
          %v806 = vld [vmem:[#allocation5 + $0x38] sm:$0xf]
          %v807 = vld [vmem:[#allocation5 + $0x3c] sm:$0xf]
          %v808 = vld [vmem:[%s5] sm:$0x1]
          %v810 = vlaneseq
          %v811 = vshrl.u32 %v810, 7
          %v812 = vsub.s32 0, %v811
          %v813 = vrot.slane %v808, %v812
          %v831 = vunpack.c.l.b16 %v792
          %v832 = vunpack.c.l.b16 %v793
          %v833 = vunpack.c.l.b16 %v794
          %v834 = vunpack.c.l.b16 %v795
          %v835 = vunpack.c.l.b16 %v796
          %v836 = vunpack.c.l.b16 %v797
          %v837 = vunpack.c.l.b16 %v798
          %v838 = vunpack.c.l.b16 %v799
          %v839 = vunpack.c.l.b16 %v800
          %v840 = vunpack.c.l.b16 %v801
          %v841 = vunpack.c.l.b16 %v802
          %v842 = vunpack.c.l.b16 %v803
          %v843 = vunpack.c.l.b16 %v804
          %v844 = vunpack.c.l.b16 %v805
          %v845 = vunpack.c.l.b16 %v806
          %v846 = vunpack.c.l.b16 %v807
          %v847 = vpack.c.b16 %v832, %v831
          %v848 = vpack.c.b16 %v834, %v833
          %v849 = vpack.c.b16 %v836, %v835
          %v850 = vpack.c.b16 %v838, %v837
          %v851 = vpack.c.b16 %v840, %v839
          %v852 = vpack.c.b16 %v842, %v841
          %v853 = vpack.c.b16 %v844, %v843
          %v854 = vpack.c.b16 %v846, %v845
          %863 = vmatprep.subr.bf16.mxu0 0
          %864 = vmatpush1.bf16.msra.mxu0 %v854
          %865 = vmatprep.subr.bf16.mxu0 0
          %866 = vmatpush1.bf16.msra.mxu0 %v853
          %867 = vmatprep.subr.bf16.mxu0 0
          %868 = vmatpush1.bf16.msra.mxu0 %v852
          %869 = vmatprep.subr.bf16.mxu0 0
          %870 = vmatpush1.bf16.msra.mxu0 %v851
          %871 = vmatprep.subr.bf16.mxu0 0
          %872 = vmatpush1.bf16.msra.mxu0 %v850
          %873 = vmatprep.subr.bf16.mxu0 0
          %874 = vmatpush1.bf16.msra.mxu0 %v849
          %875 = vmatprep.subr.bf16.mxu0 0
          %876 = vmatpush1.bf16.msra.mxu0 %v848
          %877 = vmatprep.subr.bf16.mxu0 0
          %878 = vmatpush1.bf16.msra.mxu0 %v847
          %879 = vmatprep.subr.bf16.mxu0 0
          %880 = vmatpush2.bf16.msra.mxu0 0
          %881 = vmatprep.subr.bf16.mxu0 0
          %882 = vmatpush2.bf16.msra.mxu0 0
          %883 = vmatprep.subr.bf16.mxu0 0
          %884 = vmatpush2.bf16.msra.mxu0 0
          %885 = vmatprep.subr.bf16.mxu0 0
          %886 = vmatpush2.bf16.msra.mxu0 0
          %887 = vmatprep.subr.bf16.mxu0 0
          %888 = vmatpush2.bf16.msra.mxu0 0
          %889 = vmatprep.subr.bf16.mxu0 0
          %890 = vmatpush2.bf16.msra.mxu0 0
          %891 = vmatprep.subr.bf16.mxu0 0
          %892 = vmatpush2.bf16.msra.mxu0 0
          %893 = vmatprep.subr.bf16.mxu0 0
          %894 = vmatpush2.bf16.msra.mxu0 0
          %895 = vmatprep.mubr.bf16.mxu0 0
          %896 = vmatmul.mubr.bf16.gmra.mxu0 %v784
          %v897 = vpop.f32.mrf.mxu0
          %v898 = vadd.f32 %v813, %v897
          %v899 = vpop.f32.mrf.mxu0
          %v900 = vpop.f32.mrf.mxu0
          %v901 = vadd.f32 %v813, %v900
          %v902 = vpop.f32.mrf.mxu0
          %903 = vmatprep.mubr.bf16.mxu0 0
          %904 = vmatmul.mubr.bf16.gmra.mxu0 %v785
          %v905 = vpop.f32.mrf.mxu0
          %v906 = vadd.f32 %v813, %v905
          %v907 = vpop.f32.mrf.mxu0
          %v908 = vpop.f32.mrf.mxu0
          %v909 = vadd.f32 %v813, %v908
          %v910 = vpop.f32.mrf.mxu0
          %911 = vmatprep.mubr.bf16.mxu0 0
          %912 = vmatmul.mubr.bf16.gmra.mxu0 %v786
          %v913 = vpop.f32.mrf.mxu0
          %v914 = vadd.f32 %v813, %v913
          %v915 = vpop.f32.mrf.mxu0
          %v916 = vpop.f32.mrf.mxu0
          %v917 = vadd.f32 %v813, %v916
          %v918 = vpop.f32.mrf.mxu0
          %919 = vmatprep.mubr.bf16.mxu0 0
          %920 = vmatmul.mubr.bf16.gmra.mxu0 %v787
          %v921 = vpop.f32.mrf.mxu0
          %v922 = vadd.f32 %v813, %v921
          %v923 = vpop.f32.mrf.mxu0
          %v924 = vpop.f32.mrf.mxu0
          %v925 = vadd.f32 %v813, %v924
          %v926 = vpop.f32.mrf.mxu0
          %927 = vmatprep.mubr.bf16.mxu0 0
          %928 = vmatmul.mubr.bf16.gmra.mxu0 %v788
          %v929 = vpop.f32.mrf.mxu0
          %v930 = vadd.f32 %v813, %v929
          %v931 = vpop.f32.mrf.mxu0
          %v932 = vpop.f32.mrf.mxu0
          %v933 = vadd.f32 %v813, %v932
          %v934 = vpop.f32.mrf.mxu0
          %935 = vmatprep.mubr.bf16.mxu0 0
          %936 = vmatmul.mubr.bf16.gmra.mxu0 %v789
          %v937 = vpop.f32.mrf.mxu0
          %v938 = vadd.f32 %v813, %v937
          %v939 = vpop.f32.mrf.mxu0
          %v940 = vpop.f32.mrf.mxu0
          %v941 = vadd.f32 %v813, %v940
          %v942 = vpop.f32.mrf.mxu0
          %943 = vmatprep.mubr.bf16.mxu0 0
          %944 = vmatmul.mubr.bf16.gmra.mxu0 %v790
          %v945 = vpop.f32.mrf.mxu0
          %v946 = vadd.f32 %v813, %v945
          %v947 = vpop.f32.mrf.mxu0
          %v948 = vpop.f32.mrf.mxu0
          %v949 = vadd.f32 %v813, %v948
          %v950 = vpop.f32.mrf.mxu0
          %951 = vmatprep.mubr.bf16.mxu0 0
          %952 = vmatmul.mubr.bf16.gmra.mxu0 %v791
          %v953 = vpop.f32.mrf.mxu0
          %v954 = vadd.f32 %v813, %v953
          %v955 = vpop.f32.mrf.mxu0
          %v956 = vpop.f32.mrf.mxu0
          %v957 = vadd.f32 %v813, %v956
          %v958 = vpop.f32.mrf.mxu0
          %959 = vdwg.mxu0
          %v960 = vmax.f32 %v898, 0.0
          %v961 = vmax.f32 %v901, 0.0
          %v962 = vmax.f32 %v906, 0.0
          %v963 = vmax.f32 %v909, 0.0
          %v964 = vmax.f32 %v914, 0.0
          %v965 = vmax.f32 %v917, 0.0
          %v966 = vmax.f32 %v922, 0.0
          %v967 = vmax.f32 %v925, 0.0
          %v968 = vmax.f32 %v930, 0.0
          %v969 = vmax.f32 %v933, 0.0
          %v970 = vmax.f32 %v938, 0.0
          %v971 = vmax.f32 %v941, 0.0
          %v972 = vmax.f32 %v946, 0.0
          %v973 = vmax.f32 %v949, 0.0
          %v974 = vmax.f32 %v954, 0.0
          %v975 = vmax.f32 %v957, 0.0
          %v976 = vpack.c.bf16 %v961, %v960
          %v977 = vpack.c.bf16 %v963, %v962
          %v978 = vpack.c.bf16 %v965, %v964
          %v979 = vpack.c.bf16 %v967, %v966
          %v980 = vpack.c.bf16 %v969, %v968
          %v981 = vpack.c.bf16 %v971, %v970
          %v982 = vpack.c.bf16 %v973, %v972
          %v983 = vpack.c.bf16 %v975, %v974
          %v992 = vunpack.c.l.b16 %v976
          %v993 = vunpack.c.h.b16 %v976
          %v994 = vunpack.c.l.b16 %v977
          %v995 = vunpack.c.h.b16 %v977
          %v996 = vunpack.c.l.b16 %v978
          %v997 = vunpack.c.h.b16 %v978
          %v998 = vunpack.c.l.b16 %v979
          %v999 = vunpack.c.h.b16 %v979
          %v1000 = vunpack.c.l.b16 %v980
          %v1001 = vunpack.c.h.b16 %v980
          %v1002 = vunpack.c.l.b16 %v981
          %v1003 = vunpack.c.h.b16 %v981
          %v1004 = vunpack.c.l.b16 %v982
          %v1005 = vunpack.c.h.b16 %v982
          %v1006 = vunpack.c.l.b16 %v983
          %v1007 = vunpack.c.h.b16 %v983
          %v1008 = vpack.c.b16 %v992, %v992
          %v1009 = vpack.c.b16 %v993, %v993
          %v1010 = vpack.c.b16 %v994, %v994
          %v1011 = vpack.c.b16 %v995, %v995
          %v1012 = vpack.c.b16 %v996, %v996
          %v1013 = vpack.c.b16 %v997, %v997
          %v1014 = vpack.c.b16 %v998, %v998
          %v1015 = vpack.c.b16 %v999, %v999
          %v1016 = vpack.c.b16 %v1000, %v1000
          %v1017 = vpack.c.b16 %v1001, %v1001
          %v1018 = vpack.c.b16 %v1002, %v1002
          %v1019 = vpack.c.b16 %v1003, %v1003
          %v1020 = vpack.c.b16 %v1004, %v1004
          %v1021 = vpack.c.b16 %v1005, %v1005
          %v1022 = vpack.c.b16 %v1006, %v1006
          %v1023 = vpack.c.b16 %v1007, %v1007
          %1040 = vst [vmem:[%s329] sm:$0xf] %v1008
          %1041 = vst [vmem:[%s329 + $0x4] sm:$0xf] %v1009
          %1042 = vst [vmem:[%s329 + $0x8] sm:$0xf] %v1010
          %1043 = vst [vmem:[%s329 + $0xc] sm:$0xf] %v1011
          %1044 = vst [vmem:[%s329 + $0x10] sm:$0xf] %v1012
          %1045 = vst [vmem:[%s329 + $0x14] sm:$0xf] %v1013
          %1046 = vst [vmem:[%s329 + $0x18] sm:$0xf] %v1014
          %1047 = vst [vmem:[%s329 + $0x1c] sm:$0xf] %v1015
          %1048 = vst [vmem:[%s329 + $0x20] sm:$0xf] %v1016
          %1049 = vst [vmem:[%s329 + $0x24] sm:$0xf] %v1017
          %1050 = vst [vmem:[%s329 + $0x28] sm:$0xf] %v1018
          %1051 = vst [vmem:[%s329 + $0x2c] sm:$0xf] %v1019
          %1052 = vst [vmem:[%s329 + $0x30] sm:$0xf] %v1020
          %1053 = vst [vmem:[%s329 + $0x34] sm:$0xf] %v1021
          %1054 = vst [vmem:[%s329 + $0x38] sm:$0xf] %v1022
          %1055 = vst [vmem:[%s329 + $0x3c] sm:$0xf] %v1023
        $region94: #{tpu_custom_call.1} parent=77 // pred_fallthru
          _
        %s1056 = sand.u32 %s175, 1
        %s1057 = scalar_lea.sflag [#allocation7], %s1056
        %s1058 = sand.u32 %s175, 1
        %s1059 = smul.addr %s1058, 64
        %s1060 = scalar_lea.vmem [#allocation8], %s1059
        // Predicated region
        $region95: #{tpu_custom_call.1} parent=77 // pred_check
          %p1061 = pneg %p185
        $region96: #{tpu_custom_call.1} parent=77 // pred_check_branch
          %1063 = sbr.rel (%p1061) target = $region98
        $region97: #{tpu_custom_call.1} parent=77 // pred_region
          %s1064 = smul.u32 16, %s26
          %s1066 = ssub.s32 1024, 1024
          %1067 = vsyncadd %s1057, %s1066
          %s1068 = smul.addr %s1064, 64
          %s1069 = scalar_lea.hbm %s6, %s1068
          %s1070 = sshll.u32 %s1060, 4
          %s1071 = int_to_ptr.vmem [resolvable:$true] %s1070
          %1076 = dma.vmem_to_hbm [thread:$0]  %s1071, 1024, %s1069, %s1057, 64, 64, 4
        $region98: #{tpu_custom_call.1} parent=77 // pred_fallthru
          _
      $region78: #{tpu_custom_call.1} parent=5 // pred_fallthru
        _
      %p1077 = scmp.le.s32.totalorder 2, %s17
      // Predicated region
      $region99: #{tpu_custom_call.1} parent=5 // pred_check
        %p1078 = pneg %p1077
      $region100: #{tpu_custom_call.1} parent=5 // pred_check_branch
        %1080 = sbr.rel (%p1078) target = $region102
      $region101: #{tpu_custom_call.1} parent=5 // pred_region
        %s1081 = ssub.s32 %s17, 2
        // Predicated region
        $region103: #{tpu_custom_call.1} parent=101 // pred_check
          %p1082 = pneg %p191
        $region104: #{tpu_custom_call.1} parent=101 // pred_check_branch
          %1084 = sbr.rel (%p1082) target = $region106
        $region105: #{tpu_custom_call.1} parent=101 // pred_region
          %s1085 = sand.u32 %s176, 1
          %s1086 = scalar_lea.sflag [#allocation7], %s1085
          %s1087 = sand.u32 %s176, 1
          %s1088 = smul.addr %s1087, 64
          %s1089 = scalar_lea.vmem [#allocation8], %s1088
          %1090 = dma.done %s1086, 1024
        $region106: #{tpu_custom_call.1} parent=101 // pred_fallthru
          _
      $region102: #{tpu_custom_call.1} parent=5 // pred_fallthru
        _
    $region6: #{tpu_custom_call.1} parent=1 // loop_footer
      %s21 = sadd.s32 1, %s17
    $region7: #{tpu_custom_call.1} parent=1 // loop_footer_branch
      %16 = sbr.rel target = $region3
    $region8: #{tpu_custom_call.1} parent=1 // loop_exit
      _
    %1091 = vsyncpa [#allocation6], 1
    %s1092 = scalar_lea.sflag [#allocation6], 1
    %1093 = vsyncpa %s1092, 1
    %1094 = vsyncpa [#allocation7], 1
    %s1095 = scalar_lea.sflag [#allocation7], 1
    %1096 = vsyncpa %s1095, 1

</llo_original>
